<compile_context>
chip_gen: v7x
topology: tpu7x:2x2x1
jax: 0.10.0
libtpu: 0.0.40
codegen_flags: <defaults>
</compile_context>

<pallas_src>
import math

import jax
import jax.numpy as jnp
from jax.experimental import pallas as pl
from jax.experimental.pallas import tpu as pltpu

IN_DIM = 8        # LunarLander-like state
HID_DIM = 128
OUT_DIM = 4       # number of actions
LANE = 128        # lane width for the resident weight slabs


def policy_net_kernel(x_ref, pf_ref, wh_ref, o_ref):
    # x_ref : (TB, 8)    f32  -- raw states, no lane padding
    # pf_ref: (16, 128)  f32  -- rows 0:8 = W1, row 8 = b1, row 9 = b2,
    #                            row 10 = b3 (cols >= 4 are zero), rows 11:16 pad
    # wh_ref: (256, 128) bf16 -- rows 0:128 = W2, rows 128:256 = W3 zero-padded
    #                            to 128 output columns
    # o_ref : (TB, 4)    f32  -- action probabilities
    x = x_ref[...]

    # fc1 + tanh, fully in f32 (preserves input precision; K=8 matmul is tiny).
    h = jnp.dot(x, pf_ref[0:IN_DIM, :], preferred_element_type=jnp.float32)
    h = jnp.tanh(h + pf_ref[8:9, :])

    # fc2 + tanh: bf16 MXU operands, f32 accumulation, f32 elementwise.
    h = jnp.dot(h.astype(jnp.bfloat16), wh_ref[0:HID_DIM, :],
                preferred_element_type=jnp.float32)
    h = jnp.tanh(h + pf_ref[9:10, :])

    # fc3 (weight columns padded to 128 with zeros; pads are sliced away below).
    logits = jnp.dot(h.astype(jnp.bfloat16), wh_ref[HID_DIM:2 * HID_DIM, :],
                     preferred_element_type=jnp.float32) + pf_ref[10:11, :]
    logits = logits[:, :OUT_DIM]                      # only the 4 real actions

    # Numerically stable softmax over the 4 actions. Exact division (not the
    # approx EUP reciprocal) so downstream log-probs see probs summing to 1.
    m = jnp.max(logits, axis=-1, keepdims=True)
    e = jnp.exp(logits - m)
    o_ref[...] = (e / jnp.sum(e, axis=-1, keepdims=True)).astype(o_ref.dtype)


def policy_gradient_network(x, f32_slab, bf16_slab, *, block_b=None):
    """x: (B, 8) f32 states. Returns (B, 4) f32 action probabilities."""
    B, F = x.shape
    assert F == IN_DIM

    if block_b is None:
        # Target <= 2 grid steps (an even pair feeds both v7x TensorCores; bigger
        # tiles amortize per-step overhead on v5e/v6e), capped at 1024 rows and
        # rounded up to the 8-row sublane granule.
        block_b = min(1024, max(1, pl.cdiv(B, 2)))
        block_b = max(8, ((block_b + 7) // 8) * 8)

    n_blocks = pl.cdiv(B, block_b)
    Bp = n_blocks * block_b
    xp = x if Bp == B else jnp.zeros((Bp, IN_DIM), x.dtype).at[:B, :].set(x)

    cost = pl.CostEstimate(
        flops=2 * Bp * (IN_DIM * HID_DIM + HID_DIM * HID_DIM + HID_DIM * LANE),
        transcendentals=Bp * (2 * HID_DIM + OUT_DIM),
        bytes_accessed=(Bp * IN_DIM * 4 + Bp * OUT_DIM * 4
                        + f32_slab.size * 4 + bf16_slab.size * 2),
    )

    out = pl.pallas_call(
        policy_net_kernel,
        out_shape=jax.ShapeDtypeStruct((Bp, OUT_DIM), jnp.float32),
        grid_spec=pltpu.PrefetchScalarGridSpec(
            num_scalar_prefetch=0,
            grid=(n_blocks,),
            in_specs=[
                pl.BlockSpec((block_b, IN_DIM), lambda i: (i, 0)),    # x tile (streamed)
                pl.BlockSpec((16, LANE), lambda i: (0, 0)),           # f32 slab (resident)
                pl.BlockSpec((2 * HID_DIM, LANE), lambda i: (0, 0)),  # bf16 slab (resident)
            ],
            out_specs=pl.BlockSpec((block_b, OUT_DIM), lambda i: (i, 0)),
        ),
        compiler_params=pltpu.CompilerParams(
            dimension_semantics=("parallel",),   # megacore sharding on v7x
        ),
        cost_estimate=cost,
    )(xp, f32_slab, bf16_slab)

    return out if Bp == B else out[:B]


def init_params(key):
    """Deterministic init mimicking nn.Linear's U(-1/sqrt(fan_in), 1/sqrt(fan_in))."""
    dims = [(IN_DIM, HID_DIM), (HID_DIM, HID_DIM), (HID_DIM, OUT_DIM)]
    keys = jax.random.split(key, 2 * len(dims))
    params = []
    for i, (fan_in, fan_out) in enumerate(dims):
        bound = 1.0 / math.sqrt(fan_in)
        w = jax.random.uniform(keys[2 * i], (fan_in, fan_out), jnp.float32, -bound, bound)
        b = jax.random.uniform(keys[2 * i + 1], (1, fan_out), jnp.float32, -bound, bound)
        params += [w, b]
    return tuple(params)


def pack_params(params):
    """Pack the 6 parameter arrays into one f32 slab and one bf16 weight slab."""
    w1, b1, w2, b2, w3, b3 = params
    # f32 slab (16,128): rows 0:8 = W1, row 8 = b1, row 9 = b2, row 10 = b3.
    f32_slab = jnp.zeros((16, LANE), jnp.float32)
    f32_slab = f32_slab.at[0:IN_DIM, :].set(w1)
    f32_slab = f32_slab.at[8, :].set(b1[0])
    f32_slab = f32_slab.at[9, :].set(b2[0])
    f32_slab = f32_slab.at[10, :OUT_DIM].set(b3[0])
    # bf16 slab (256,128): rows 0:128 = W2, rows 128:256 = W3 zero-padded to 128 cols.
    w3p = jnp.zeros((HID_DIM, LANE), jnp.float32).at[:, :OUT_DIM].set(w3)
    bf16_slab = jnp.concatenate([w2, w3p], axis=0).astype(jnp.bfloat16)
    return f32_slab, bf16_slab


def reference_forward(x, params):
    w1, b1, w2, b2, w3, b3 = params
    h = jnp.tanh(x @ w1 + b1)
    h = jnp.tanh(h @ w2 + b2)
    return jax.nn.softmax(h @ w3 + b3, axis=-1)


if __name__ == "__main__":
    key = jax.random.PRNGKey(0)
    pkey, xkey = jax.random.split(key)
    params = init_params(pkey)
    f32_slab, bf16_slab = pack_params(params)

    # Batch of 512 -> 2 grid steps of 256 rows (even block count for v7x megacore),
    # no batch padding needed.
    B = 512
    x = jax.random.normal(xkey, (B, IN_DIM), dtype=jnp.float32)

    fwd = jax.jit(policy_gradient_network)
    out = jax.block_until_ready(fwd(x, f32_slab, bf16_slab))

    ref = reference_forward(x, params)
    assert out.shape == (B, OUT_DIM)
    # Exact softmax division -> probabilities sum to 1 up to f32 rounding.
    assert jnp.allclose(jnp.sum(out, axis=-1), 1.0, atol=1e-5)
    # fc2/fc3 use bf16 MXU operands -> loosened tolerance vs. the f32 reference.
    assert jnp.allclose(out, ref, atol=3e-2, rtol=3e-2)

    print("KERNEL_OK")
</pallas_src>

<mosaic_0001>
module attributes {stable_mosaic.version = 11 : i64} {
  func.func @policy_net_kernel(%arg0: i32, %arg1: memref<256x8xf32, #tpu.memory_space<vmem>>, %arg2: memref<16x128xf32, #tpu.memory_space<vmem>>, %arg3: memref<256x128xbf16, #tpu.memory_space<vmem>>, %arg4: memref<256x4xf32, #tpu.memory_space<vmem>>) attributes {dimension_semantics = [#tpu.dimension_semantics<parallel>], iteration_bounds = array<i64: 2>, scalar_prefetch = 0 : i64, scratch_operands = 0 : i64, tpu.core_type = #tpu.core_type<tc>, window_params = [{transform_indices = @transform_0, window_bounds = array<i64: 256, 8>}, {pipeline_mode = #tpu.pipeline_mode<synchronous>, transform_indices = @transform_1, window_bounds = array<i64: 16, 128>}, {pipeline_mode = #tpu.pipeline_mode<synchronous>, transform_indices = @transform_2, window_bounds = array<i64: 256, 128>}, {transform_indices = @transform_3, window_bounds = array<i64: 256, 4>}]} {
    %c0 = arith.constant 0 : index
    %c0_0 = arith.constant 0 : index
    %0 = vector.load %arg1[%c0, %c0_0] : memref<256x8xf32, #tpu.memory_space<vmem>>, vector<256x8xf32>
    %c0_1 = arith.constant 0 : index
    %c0_2 = arith.constant 0 : index
    %1 = vector.load %arg2[%c0_1, %c0_2] : memref<16x128xf32, #tpu.memory_space<vmem>>, vector<8x128xf32>
    %cst = arith.constant dense<0.000000e+00> : vector<256x128xf32>
    %2 = tpu.matmul %0, %1, %cst {dimension_numbers = #tpu.dot_dimension_numbers<[1], [0], [0], [1], [0, 0, 1, 1], [], []>} : vector<256x8xf32>, vector<8x128xf32>, vector<256x128xf32> -> vector<256x128xf32>
    %c8 = arith.constant 8 : index
    %c0_3 = arith.constant 0 : index
    %3 = vector.load %arg2[%c8, %c0_3] : memref<16x128xf32, #tpu.memory_space<vmem>>, vector<1x128xf32>
    %4 = vector.broadcast %3 : vector<1x128xf32> to vector<256x128xf32>
    %5 = arith.addf %2, %4 : vector<256x128xf32>
    %6 = math.tanh %5 : vector<256x128xf32>
    %7 = arith.truncf %6 : vector<256x128xf32> to vector<256x128xbf16>
    %c0_4 = arith.constant 0 : index
    %c0_5 = arith.constant 0 : index
    %8 = vector.load %arg3[%c0_4, %c0_5] : memref<256x128xbf16, #tpu.memory_space<vmem>>, vector<128x128xbf16>
    %cst_6 = arith.constant dense<0.000000e+00> : vector<256x128xf32>
    %9 = tpu.matmul %7, %8, %cst_6 {dimension_numbers = #tpu.dot_dimension_numbers<[1], [0], [0], [1], [0, 0, 1, 1], [], []>} : vector<256x128xbf16>, vector<128x128xbf16>, vector<256x128xf32> -> vector<256x128xf32>
    %c9 = arith.constant 9 : index
    %c0_7 = arith.constant 0 : index
    %10 = vector.load %arg2[%c9, %c0_7] : memref<16x128xf32, #tpu.memory_space<vmem>>, vector<1x128xf32>
    %11 = vector.broadcast %10 : vector<1x128xf32> to vector<256x128xf32>
    %12 = arith.addf %9, %11 : vector<256x128xf32>
    %13 = math.tanh %12 : vector<256x128xf32>
    %14 = arith.truncf %13 : vector<256x128xf32> to vector<256x128xbf16>
    %c128 = arith.constant 128 : index
    %c0_8 = arith.constant 0 : index
    %15 = vector.load %arg3[%c128, %c0_8] : memref<256x128xbf16, #tpu.memory_space<vmem>>, vector<128x128xbf16>
    %cst_9 = arith.constant dense<0.000000e+00> : vector<256x128xf32>
    %16 = tpu.matmul %14, %15, %cst_9 {dimension_numbers = #tpu.dot_dimension_numbers<[1], [0], [0], [1], [0, 0, 1, 1], [], []>} : vector<256x128xbf16>, vector<128x128xbf16>, vector<256x128xf32> -> vector<256x128xf32>
    %c10 = arith.constant 10 : index
    %c0_10 = arith.constant 0 : index
    %17 = vector.load %arg2[%c10, %c0_10] : memref<16x128xf32, #tpu.memory_space<vmem>>, vector<1x128xf32>
    %18 = vector.broadcast %17 : vector<1x128xf32> to vector<256x128xf32>
    %19 = arith.addf %16, %18 : vector<256x128xf32>
    %20 = vector.extract_strided_slice %19 {offsets = [0, 0], sizes = [256, 4], strides = [1, 1]} : vector<256x128xf32> to vector<256x4xf32>
    %cst_11 = arith.constant dense<0xFF800000> : vector<256xf32>
    %21 = vector.multi_reduction <maximumf>, %20, %cst_11 [1] : vector<256x4xf32> to vector<256xf32>
    %22 = vector.shape_cast %21 : vector<256xf32> to vector<256x1xf32>
    %23 = vector.broadcast %22 : vector<256x1xf32> to vector<256x4xf32>
    %24 = arith.subf %20, %23 : vector<256x4xf32>
    %25 = math.exp %24 : vector<256x4xf32>
    %cst_12 = arith.constant dense<0.000000e+00> : vector<256xf32>
    %26 = vector.multi_reduction <add>, %25, %cst_12 [1] : vector<256x4xf32> to vector<256xf32>
    %27 = vector.shape_cast %26 : vector<256xf32> to vector<256x1xf32>
    %28 = vector.broadcast %27 : vector<256x1xf32> to vector<256x4xf32>
    %29 = arith.divf %25, %28 : vector<256x4xf32>
    %c0_13 = arith.constant 0 : index
    %c0_14 = arith.constant 0 : index
    %30 = vector.load %arg4[%c0_13, %c0_14] : memref<256x4xf32, #tpu.memory_space<vmem>>, vector<256x4xf32>
    tpu.vector_store %arg4[%c0_13, %c0_14], %29 {strides = array<i32>} : memref<256x4xf32, #tpu.memory_space<vmem>>, vector<256x4xf32>,
    return
  }
  func.func @transform_0(%arg0: i32) -> (i32, i32) {
    %c0_i32 = arith.constant 0 : i32
    %c0_i32_0 = arith.constant 0 : i32
    return %arg0, %c0_i32 : i32, i32
  }
  func.func @transform_1(%arg0: i32) -> (i32, i32) {
    %c0_i32 = arith.constant 0 : i32
    %c0_i32_0 = arith.constant 0 : i32
    %c0_i32_1 = arith.constant 0 : i32
    return %c0_i32, %c0_i32_0 : i32, i32
  }
  func.func @transform_2(%arg0: i32) -> (i32, i32) {
    %c0_i32 = arith.constant 0 : i32
    %c0_i32_0 = arith.constant 0 : i32
    %c0_i32_1 = arith.constant 0 : i32
    return %c0_i32, %c0_i32_0 : i32, i32
  }
  func.func @transform_3(%arg0: i32) -> (i32, i32) {
    %c0_i32 = arith.constant 0 : i32
    %c0_i32_0 = arith.constant 0 : i32
    return %arg0, %c0_i32 : i32, i32
  }
}

</mosaic_0001>

<llo_original>
// kernel: policy_gradient_network.1
$region0: #{policy_gradient_network.1}
  #allocation0 [shape = 'u32[]', space=smem, size = 0x4, offset = 0x4, fixed_abs, tag = 'smem constant byte address 0x4 - core index']
  #allocation1 [shape = 'u32[144,128]{1,0:T(1,128)}', space=vmem, size = 0x12000, scoped, tag = 'internal scratch']
  %s0 = inlined_call_operand.vmem [shape: f32[512,8], index: 0, kind: input, shape index: {}]
  %s1 = inlined_call_operand.vmem [shape: f32[16,128], index: 1, kind: input, shape index: {}]
  %s2 = inlined_call_operand.vmem [shape: bf16[256,128], index: 2, kind: input, shape index: {}]
  %s3 = inlined_call_operand.vmem [shape: f32[512,4], index: 3, kind: output, shape index: {}]
  %s4 = sld [smem:[#allocation0]]
  $region45: #{policy_gradient_network.1} parent=0
    _
  %s6 = ssub.s32 1, %s4
  %s7 = scalar_select 0, %s6, %s4
  loop: start=0, step=1, limit=4
  $region2: #{policy_gradient_network.1} parent=0 // loop_pre_header
    _
  $region3: #{policy_gradient_network.1} parent=0 // loop_header
    %s9 = sphi 0, %s13
    %p10 = scmp.ge.s32.totalorder %s9, 4
    %s19 = sphi 0, %s21
    %s22 = sphi 0, %s19
    %s23 = sphi 0, %s22
    %s39 = sphi 0, %s23
    %s43 = sphi 0, %s43
    %s45 = sphi 0, %s43
    %s46 = sphi 0, %s45
    %s60 = sphi 0, %s46
    %s64 = sphi 0, %s64
    %s66 = sphi 0, %s64
    %s67 = sphi 0, %s66
    %s81 = sphi 0, %s67
    %s87 = sphi 0, %s89
    %s90 = sphi 0, %s87
    %s91 = sphi 0, %s90
    %s107 = sphi 0, %s91
  $region4: #{policy_gradient_network.1} parent=0 // loop_header_branch
    %12 = sbr.rel (%p10) target = $region8
  $region5: #{policy_gradient_network.1} parent=0 // loop_body
    %s14 = ssub.s32 %s9, 1
    %s15 = ssub.s32 %s9, 2
    %s16 = sadd.s32 %s9, 1
    %s17 = ssub.s32 %s9, %s16
    %p18 = scmp.eq.s32.totalorder %s17, 0
    %s20 = sadd.s32 %s19, 1
    %s21 = scalar_select %p18, %s19, %s20
    %p24 = pneg %p18
    %p25 = scmp.eq.s32.totalorder %s9, 1
    %p26 = por %p24, %p25
    %p27 = scmp.ne.s32.totalorder %s19, %s22
    %p28 = scmp.eq.s32.totalorder %s9, 0
    %p29 = por %p27, %p28
    %p30 = scmp.ne.s32.totalorder %s19, %s22
    %p31 = scmp.eq.s32.totalorder %s14, 1
    %p32 = por %p30, %p31
    %p33 = scmp.ne.s32.totalorder %s22, %s23
    %p34 = scmp.eq.s32.totalorder %s14, 0
    %p35 = por %p33, %p34
    %p36 = scmp.ne.s32.totalorder %s22, %s23
    %p37 = scmp.eq.s32.totalorder %s15, 1
    %p38 = por %p36, %p37
    %p40 = scmp.ne.s32.totalorder %s23, %s39
    %p41 = scmp.eq.s32.totalorder %s15, 0
    %p42 = por %p40, %p41
    %s44 = sadd.s32 %s43, 1
    %p47 = scmp.eq.s32.totalorder %s9, 1
    %p48 = scmp.ne.s32.totalorder %s43, %s45
    %p49 = scmp.eq.s32.totalorder %s9, 0
    %p50 = por %p48, %p49
    %p51 = scmp.ne.s32.totalorder %s43, %s45
    %p52 = scmp.eq.s32.totalorder %s14, 1
    %p53 = por %p51, %p52
    %p54 = scmp.ne.s32.totalorder %s45, %s46
    %p55 = scmp.eq.s32.totalorder %s14, 0
    %p56 = por %p54, %p55
    %p57 = scmp.ne.s32.totalorder %s45, %s46
    %p58 = scmp.eq.s32.totalorder %s15, 1
    %p59 = por %p57, %p58
    %p61 = scmp.ne.s32.totalorder %s46, %s60
    %p62 = scmp.eq.s32.totalorder %s15, 0
    %p63 = por %p61, %p62
    %s65 = sadd.s32 %s64, 1
    %p68 = scmp.eq.s32.totalorder %s9, 1
    %p69 = scmp.ne.s32.totalorder %s64, %s66
    %p70 = scmp.eq.s32.totalorder %s9, 0
    %p71 = por %p69, %p70
    %p72 = scmp.ne.s32.totalorder %s64, %s66
    %p73 = scmp.eq.s32.totalorder %s14, 1
    %p74 = por %p72, %p73
    %p75 = scmp.ne.s32.totalorder %s66, %s67
    %p76 = scmp.eq.s32.totalorder %s14, 0
    %p77 = por %p75, %p76
    %p78 = scmp.ne.s32.totalorder %s66, %s67
    %p79 = scmp.eq.s32.totalorder %s15, 1
    %p80 = por %p78, %p79
    %p82 = scmp.ne.s32.totalorder %s67, %s81
    %p83 = scmp.eq.s32.totalorder %s15, 0
    %p84 = por %p82, %p83
    %s85 = ssub.s32 %s9, %s16
    %p86 = scmp.eq.s32.totalorder %s85, 0
    %s88 = sadd.s32 %s87, 1
    %s89 = scalar_select %p86, %s87, %s88
    %p92 = pneg %p86
    %p93 = scmp.eq.s32.totalorder %s9, 1
    %p94 = por %p92, %p93
    %p95 = scmp.ne.s32.totalorder %s87, %s90
    %p96 = scmp.eq.s32.totalorder %s9, 0
    %p97 = por %p95, %p96
    %p98 = scmp.ne.s32.totalorder %s87, %s90
    %p99 = scmp.eq.s32.totalorder %s14, 1
    %p100 = por %p98, %p99
    %p101 = scmp.ne.s32.totalorder %s90, %s91
    %p102 = scmp.eq.s32.totalorder %s14, 0
    %p103 = por %p101, %p102
    %p104 = scmp.ne.s32.totalorder %s90, %s91
    %p105 = scmp.eq.s32.totalorder %s15, 1
    %p106 = por %p104, %p105
    %p108 = scmp.ne.s32.totalorder %s91, %s107
    %p109 = scmp.eq.s32.totalorder %s15, 0
    %p110 = por %p108, %p109
    %p111 = scmp.le.s32.totalorder 1, %s9
    %p112 = scmp.lt.s32.totalorder %s9, 3
    %p113 = pnand %p111, %p112
    %p114 = pneg %p113
    // Predicated region
    $region9: #{policy_gradient_network.1} parent=5 // pred_check
      _
    $region10: #{policy_gradient_network.1} parent=5 // pred_check_branch
      %116 = sbr.rel (%p113) target = $region12
    $region11: #{policy_gradient_network.1} parent=5 // pred_region
      %s117 = ssub.s32 %s9, 1
      // Predicated region
      $region13: #{policy_gradient_network.1} parent=11 // pred_check
        %p118 = pneg %p56
      $region14: #{policy_gradient_network.1} parent=11 // pred_check_branch
        %120 = sbr.rel (%p118) target = $region16
      $region15: #{policy_gradient_network.1} parent=11 // pred_region
        _
      $region16: #{policy_gradient_network.1} parent=11 // pred_fallthru
        _
      // Predicated region
      $region17: #{policy_gradient_network.1} parent=11 // pred_check
        %p121 = pneg %p77
      $region18: #{policy_gradient_network.1} parent=11 // pred_check_branch
        %123 = sbr.rel (%p121) target = $region20
      $region19: #{policy_gradient_network.1} parent=11 // pred_region
        _
      $region20: #{policy_gradient_network.1} parent=11 // pred_fallthru
        _
    $region12: #{policy_gradient_network.1} parent=5 // pred_fallthru
      _
    %p124 = scmp.lt.s32.totalorder %s9, 2
    // Predicated region
    $region21: #{policy_gradient_network.1} parent=5 // pred_check
      %p125 = pneg %p124
    $region22: #{policy_gradient_network.1} parent=5 // pred_check_branch
      %127 = sbr.rel (%p125) target = $region24
    $region23: #{policy_gradient_network.1} parent=5 // pred_region
      // Predicated region
      $region25: #{policy_gradient_network.1} parent=23 // pred_check
        %p128 = pneg %p29
      $region26: #{policy_gradient_network.1} parent=23 // pred_check_branch
        %130 = sbr.rel (%p128) target = $region28
      $region27: #{policy_gradient_network.1} parent=23 // pred_region
        %s131 = smul.u32 32, %s9
        %p132 = scmp.lt.s32.totalorder %s131, 63
        %s133 = scalar_select %p132, %s131, 63
        %s134 = smul.addr %s133, 8
        %s135 = scalar_lea.vmem %s0, %s134
        %s136 = smul.u32 32, %s9
      $region28: #{policy_gradient_network.1} parent=23 // pred_fallthru
        _
    $region24: #{policy_gradient_network.1} parent=5 // pred_fallthru
      _
    %p137 = scmp.le.s32.totalorder 1, %s9
    %p138 = scmp.lt.s32.totalorder %s9, 3
    %p139 = pnand %p137, %p138
    %p140 = pneg %p139
    // Predicated region
    $region29: #{policy_gradient_network.1} parent=5 // pred_check
      _
    $region30: #{policy_gradient_network.1} parent=5 // pred_check_branch
      %142 = sbr.rel (%p139) target = $region32
    $region31: #{policy_gradient_network.1} parent=5 // pred_region
      %s143 = ssub.s32 %s9, 1
      %s144 = smul.u32 32, %s14
      %p145 = scmp.lt.s32.totalorder %s144, 63
      %s146 = scalar_select %p145, %s144, 63
      %s147 = smul.addr %s146, 8
      %s148 = scalar_lea.vmem %s0, %s147
      %p149 = pneg %p35
      %p150 = pneg %p32
      %p151 = pneg %p56
      %p152 = pneg %p53
      %p153 = pneg %p77
      %p154 = pneg %p74
      %p155 = pneg %p103
      %p156 = pneg %p100
      %s157 = smul.u32 32, %s14
      %p158 = scmp.lt.s32.totalorder %s157, 63
      %s159 = scalar_select %p158, %s157, 63
      %s160 = smul.addr %s159, 8
      %s161 = scalar_lea.vmem %s3, %s160
      %s162 = smul.u32 32, %s14
      %p163 = scmp.lt.s32.totalorder %s162, 63
      %s164 = scalar_select %p163, %s162, 63
      %s165 = smul.addr %s164, 8
      %s166 = scalar_lea.vmem %s0, %s165
      %s167 = smul.u32 32, %s14
      %s168 = smul.u32 32, %s14
      %p169 = scmp.lt.s32.totalorder %s168, 63
      %s170 = scalar_select %p169, %s168, 63
      %s171 = smul.addr %s170, 8
      %s172 = scalar_lea.vmem %s3, %s171
      %s173 = smul.u32 32, %s14
      %v175 = vld [vmem:[%s166] sm:$0xff]
      %v176 = vld [vmem:[%s166 + $0x8] sm:$0xff]
      %v177 = vld [vmem:[%s166 + $0x10] sm:$0xff]
      %v178 = vld [vmem:[%s166 + $0x18] sm:$0xff]
      %v179 = vld [vmem:[%s166 + $0x20] sm:$0xff]
      %v180 = vld [vmem:[%s166 + $0x28] sm:$0xff]
      %v181 = vld [vmem:[%s166 + $0x30] sm:$0xff]
      %v182 = vld [vmem:[%s166 + $0x38] sm:$0xff]
      %v183 = vld [vmem:[%s166 + $0x40] sm:$0xff]
      %v184 = vld [vmem:[%s166 + $0x48] sm:$0xff]
      %v185 = vld [vmem:[%s166 + $0x50] sm:$0xff]
      %v186 = vld [vmem:[%s166 + $0x58] sm:$0xff]
      %v187 = vld [vmem:[%s166 + $0x60] sm:$0xff]
      %v188 = vld [vmem:[%s166 + $0x68] sm:$0xff]
      %v189 = vld [vmem:[%s166 + $0x70] sm:$0xff]
      %v190 = vld [vmem:[%s166 + $0x78] sm:$0xff]
      %v191 = vld [vmem:[%s166 + $0x80] sm:$0xff]
      %v192 = vld [vmem:[%s166 + $0x88] sm:$0xff]
      %v193 = vld [vmem:[%s166 + $0x90] sm:$0xff]
      %v194 = vld [vmem:[%s166 + $0x98] sm:$0xff]
      %v195 = vld [vmem:[%s166 + $0xa0] sm:$0xff]
      %v196 = vld [vmem:[%s166 + $0xa8] sm:$0xff]
      %v197 = vld [vmem:[%s166 + $0xb0] sm:$0xff]
      %v198 = vld [vmem:[%s166 + $0xb8] sm:$0xff]
      %v199 = vld [vmem:[%s166 + $0xc0] sm:$0xff]
      %v200 = vld [vmem:[%s166 + $0xc8] sm:$0xff]
      %v201 = vld [vmem:[%s166 + $0xd0] sm:$0xff]
      %v202 = vld [vmem:[%s166 + $0xd8] sm:$0xff]
      %v203 = vld [vmem:[%s166 + $0xe0] sm:$0xff]
      %v204 = vld [vmem:[%s166 + $0xe8] sm:$0xff]
      %v205 = vld [vmem:[%s166 + $0xf0] sm:$0xff]
      %v206 = vld [vmem:[%s166 + $0xf8] sm:$0xff]
      %v207 = vld [vmem:[%s1] sm:$0xff]
      %v208 = vld [vmem:[%s1 + $0x8] sm:$0x1]
      %v209 = vlaneseq
      %v210 = vshrl.u32 %v209, 7
      %v211 = vsub.s32 0, %v210
      %v212 = vrot.slane %v208, %v211
      %vm213 = vcmask 64512
      %v215 = vsel %vm213, %v175, 0
      %v218 = vsel %vm213, %v176, 0
      %v221 = vsel %vm213, %v177, 0
      %v224 = vsel %vm213, %v178, 0
      %v227 = vsel %vm213, %v179, 0
      %v230 = vsel %vm213, %v180, 0
      %v233 = vsel %vm213, %v181, 0
      %v236 = vsel %vm213, %v182, 0
      %v239 = vsel %vm213, %v183, 0
      %v242 = vsel %vm213, %v184, 0
      %v245 = vsel %vm213, %v185, 0
      %v248 = vsel %vm213, %v186, 0
      %v251 = vsel %vm213, %v187, 0
      %v254 = vsel %vm213, %v188, 0
      %v257 = vsel %vm213, %v189, 0
      %v260 = vsel %vm213, %v190, 0
      %v263 = vsel %vm213, %v191, 0
      %v266 = vsel %vm213, %v192, 0
      %v269 = vsel %vm213, %v193, 0
      %v272 = vsel %vm213, %v194, 0
      %v275 = vsel %vm213, %v195, 0
      %v278 = vsel %vm213, %v196, 0
      %v281 = vsel %vm213, %v197, 0
      %v284 = vsel %vm213, %v198, 0
      %v287 = vsel %vm213, %v199, 0
      %v290 = vsel %vm213, %v200, 0
      %v293 = vsel %vm213, %v201, 0
      %v296 = vsel %vm213, %v202, 0
      %v299 = vsel %vm213, %v203, 0
      %v302 = vsel %vm213, %v204, 0
      %v305 = vsel %vm213, %v205, 0
      %v308 = vsel %vm213, %v206, 0
      %310 = vmatprep.subr.mxu0 0.0
      %311 = vmatpush1.msra.mxu0 %v207
      %312 = vmatprep.subr.mxu0 0.0
      %313 = vmatpush1.msra.mxu0 0.0
      %314 = vmatprep.subr.mxu0 0.0
      %315 = vmatpush1.msra.mxu0 0.0
      %316 = vmatprep.subr.mxu0 0.0
      %317 = vmatpush1.msra.mxu0 0.0
      %318 = vmatprep.subr.mxu0 0.0
      %319 = vmatpush1.msra.mxu0 0.0
      %320 = vmatprep.subr.mxu0 0.0
      %321 = vmatpush1.msra.mxu0 0.0
      %322 = vmatprep.subr.mxu0 0.0
      %323 = vmatpush1.msra.mxu0 0.0
      %324 = vmatprep.subr.mxu0 0.0
      %325 = vmatpush1.msra.mxu0 0.0
      %326 = vmatprep.subr.mxu0 0.0
      %327 = vmatpush1.msra.mxu0 0.0
      %328 = vmatprep.subr.mxu0 0.0
      %329 = vmatpush1.msra.mxu0 0.0
      %330 = vmatprep.subr.mxu0 0.0
      %331 = vmatpush1.msra.mxu0 0.0
      %332 = vmatprep.subr.mxu0 0.0
      %333 = vmatpush1.msra.mxu0 0.0
      %334 = vmatprep.subr.mxu0 0.0
      %335 = vmatpush1.msra.mxu0 0.0
      %336 = vmatprep.subr.mxu0 0.0
      %337 = vmatpush1.msra.mxu0 0.0
      %338 = vmatprep.subr.mxu0 0.0
      %339 = vmatpush1.msra.mxu0 0.0
      %340 = vmatprep.subr.mxu0 0.0
      %341 = vmatpush1.msra.mxu0 0.0
      %342 = vmatprep.subr.mxu0 0.0
      %343 = vmatpush1.msra.mxu0 0.0
      %344 = vmatprep.subr.mxu0 0.0
      %345 = vmatpush1.msra.mxu0 0.0
      %346 = vmatprep.subr.mxu0 0.0
      %347 = vmatpush1.msra.mxu0 0.0
      %348 = vmatprep.subr.mxu0 0.0
      %349 = vmatpush1.msra.mxu0 0.0
      %350 = vmatprep.subr.mxu0 0.0
      %351 = vmatpush1.msra.mxu0 0.0
      %352 = vmatprep.subr.mxu0 0.0
      %353 = vmatpush1.msra.mxu0 0.0
      %354 = vmatprep.subr.mxu0 0.0
      %355 = vmatpush1.msra.mxu0 0.0
      %356 = vmatprep.subr.mxu0 0.0
      %357 = vmatpush1.msra.mxu0 0.0
      %358 = vmatprep.subr.mxu0 0.0
      %359 = vmatpush1.msra.mxu0 0.0
      %360 = vmatprep.subr.mxu0 0.0
      %361 = vmatpush1.msra.mxu0 0.0
      %362 = vmatprep.subr.mxu0 0.0
      %363 = vmatpush1.msra.mxu0 0.0
      %364 = vmatprep.subr.mxu0 0.0
      %365 = vmatpush1.msra.mxu0 0.0
      %366 = vmatprep.subr.mxu0 0.0
      %367 = vmatpush1.msra.mxu0 0.0
      %368 = vmatprep.subr.mxu0 0.0
      %369 = vmatpush1.msra.mxu0 0.0
      %370 = vmatprep.subr.mxu0 0.0
      %371 = vmatpush1.msra.mxu0 0.0
      %372 = vmatprep.subr.mxu0 0.0
      %373 = vmatpush1.msra.mxu0 0.0
      %374 = vmatprep.mubr.f32.mxu0 0.0
      %375 = vmatmul.mubr.f32.gmra.mrb[0].mxu0 %v215
      %v376 = vpop.f32.mrb[0].mxu0
      %v377 = vadd.f32 %v212, %v376
      %v378 = vpop.f32.mrb[0].mxu0
      %379 = vmatprep.mubr.f32.mxu0 0.0
      %380 = vmatmul.mubr.f32.gmra.mrb[0].mxu0 %v218
      %v381 = vpop.f32.mrb[0].mxu0
      %v382 = vadd.f32 %v212, %v381
      %v383 = vpop.f32.mrb[0].mxu0
      %384 = vmatprep.mubr.f32.mxu0 0.0
      %385 = vmatmul.mubr.f32.gmra.mrb[0].mxu0 %v221
      %v386 = vpop.f32.mrb[0].mxu0
      %v387 = vadd.f32 %v212, %v386
      %v388 = vpop.f32.mrb[0].mxu0
      %389 = vmatprep.mubr.f32.mxu0 0.0
      %390 = vmatmul.mubr.f32.gmra.mrb[0].mxu0 %v224
      %v391 = vpop.f32.mrb[0].mxu0
      %v392 = vadd.f32 %v212, %v391
      %v393 = vpop.f32.mrb[0].mxu0
      %394 = vmatprep.mubr.f32.mxu0 0.0
      %395 = vmatmul.mubr.f32.gmra.mrb[0].mxu0 %v227
      %v396 = vpop.f32.mrb[0].mxu0
      %v397 = vadd.f32 %v212, %v396
      %v398 = vpop.f32.mrb[0].mxu0
      %399 = vmatprep.mubr.f32.mxu0 0.0
      %400 = vmatmul.mubr.f32.gmra.mrb[0].mxu0 %v230
      %v401 = vpop.f32.mrb[0].mxu0
      %v402 = vadd.f32 %v212, %v401
      %v403 = vpop.f32.mrb[0].mxu0
      %404 = vmatprep.mubr.f32.mxu0 0.0
      %405 = vmatmul.mubr.f32.gmra.mrb[0].mxu0 %v233
      %v406 = vpop.f32.mrb[0].mxu0
      %v407 = vadd.f32 %v212, %v406
      %v408 = vpop.f32.mrb[0].mxu0
      %409 = vmatprep.mubr.f32.mxu0 0.0
      %410 = vmatmul.mubr.f32.gmra.mrb[0].mxu0 %v236
      %v411 = vpop.f32.mrb[0].mxu0
      %v412 = vadd.f32 %v212, %v411
      %v413 = vpop.f32.mrb[0].mxu0
      %414 = vmatprep.mubr.f32.mxu0 0.0
      %415 = vmatmul.mubr.f32.gmra.mrb[0].mxu0 %v239
      %v416 = vpop.f32.mrb[0].mxu0
      %v417 = vadd.f32 %v212, %v416
      %v418 = vpop.f32.mrb[0].mxu0
      %419 = vmatprep.mubr.f32.mxu0 0.0
      %420 = vmatmul.mubr.f32.gmra.mrb[0].mxu0 %v242
      %v421 = vpop.f32.mrb[0].mxu0
      %v422 = vadd.f32 %v212, %v421
      %v423 = vpop.f32.mrb[0].mxu0
      %424 = vmatprep.mubr.f32.mxu0 0.0
      %425 = vmatmul.mubr.f32.gmra.mrb[0].mxu0 %v245
      %v426 = vpop.f32.mrb[0].mxu0
      %v427 = vadd.f32 %v212, %v426
      %v428 = vpop.f32.mrb[0].mxu0
      %429 = vmatprep.mubr.f32.mxu0 0.0
      %430 = vmatmul.mubr.f32.gmra.mrb[0].mxu0 %v248
      %v431 = vpop.f32.mrb[0].mxu0
      %v432 = vadd.f32 %v212, %v431
      %v433 = vpop.f32.mrb[0].mxu0
      %434 = vmatprep.mubr.f32.mxu0 0.0
      %435 = vmatmul.mubr.f32.gmra.mrb[0].mxu0 %v251
      %v436 = vpop.f32.mrb[0].mxu0
      %v437 = vadd.f32 %v212, %v436
      %v438 = vpop.f32.mrb[0].mxu0
      %439 = vmatprep.mubr.f32.mxu0 0.0
      %440 = vmatmul.mubr.f32.gmra.mrb[0].mxu0 %v254
      %v441 = vpop.f32.mrb[0].mxu0
      %v442 = vadd.f32 %v212, %v441
      %v443 = vpop.f32.mrb[0].mxu0
      %444 = vmatprep.mubr.f32.mxu0 0.0
      %445 = vmatmul.mubr.f32.gmra.mrb[0].mxu0 %v257
      %v446 = vpop.f32.mrb[0].mxu0
      %v447 = vadd.f32 %v212, %v446
      %v448 = vpop.f32.mrb[0].mxu0
      %449 = vmatprep.mubr.f32.mxu0 0.0
      %450 = vmatmul.mubr.f32.gmra.mrb[0].mxu0 %v260
      %v451 = vpop.f32.mrb[0].mxu0
      %v452 = vadd.f32 %v212, %v451
      %v453 = vpop.f32.mrb[0].mxu0
      %454 = vmatprep.mubr.f32.mxu0 0.0
      %455 = vmatmul.mubr.f32.gmra.mrb[0].mxu0 %v263
      %v456 = vpop.f32.mrb[0].mxu0
      %v457 = vadd.f32 %v212, %v456
      %v458 = vpop.f32.mrb[0].mxu0
      %459 = vmatprep.mubr.f32.mxu0 0.0
      %460 = vmatmul.mubr.f32.gmra.mrb[0].mxu0 %v266
      %v461 = vpop.f32.mrb[0].mxu0
      %v462 = vadd.f32 %v212, %v461
      %v463 = vpop.f32.mrb[0].mxu0
      %464 = vmatprep.mubr.f32.mxu0 0.0
      %465 = vmatmul.mubr.f32.gmra.mrb[0].mxu0 %v269
      %v466 = vpop.f32.mrb[0].mxu0
      %v467 = vadd.f32 %v212, %v466
      %v468 = vpop.f32.mrb[0].mxu0
      %469 = vmatprep.mubr.f32.mxu0 0.0
      %470 = vmatmul.mubr.f32.gmra.mrb[0].mxu0 %v272
      %v471 = vpop.f32.mrb[0].mxu0
      %v472 = vadd.f32 %v212, %v471
      %v473 = vpop.f32.mrb[0].mxu0
      %474 = vmatprep.mubr.f32.mxu0 0.0
      %475 = vmatmul.mubr.f32.gmra.mrb[0].mxu0 %v275
      %v476 = vpop.f32.mrb[0].mxu0
      %v477 = vadd.f32 %v212, %v476
      %v478 = vpop.f32.mrb[0].mxu0
      %479 = vmatprep.mubr.f32.mxu0 0.0
      %480 = vmatmul.mubr.f32.gmra.mrb[0].mxu0 %v278
      %v481 = vpop.f32.mrb[0].mxu0
      %v482 = vadd.f32 %v212, %v481
      %v483 = vpop.f32.mrb[0].mxu0
      %484 = vmatprep.mubr.f32.mxu0 0.0
      %485 = vmatmul.mubr.f32.gmra.mrb[0].mxu0 %v281
      %v486 = vpop.f32.mrb[0].mxu0
      %v487 = vadd.f32 %v212, %v486
      %v488 = vpop.f32.mrb[0].mxu0
      %489 = vmatprep.mubr.f32.mxu0 0.0
      %490 = vmatmul.mubr.f32.gmra.mrb[0].mxu0 %v284
      %v491 = vpop.f32.mrb[0].mxu0
      %v492 = vadd.f32 %v212, %v491
      %v493 = vpop.f32.mrb[0].mxu0
      %494 = vmatprep.mubr.f32.mxu0 0.0
      %495 = vmatmul.mubr.f32.gmra.mrb[0].mxu0 %v287
      %v496 = vpop.f32.mrb[0].mxu0
      %v497 = vadd.f32 %v212, %v496
      %v498 = vpop.f32.mrb[0].mxu0
      %499 = vmatprep.mubr.f32.mxu0 0.0
      %500 = vmatmul.mubr.f32.gmra.mrb[0].mxu0 %v290
      %v501 = vpop.f32.mrb[0].mxu0
      %v502 = vadd.f32 %v212, %v501
      %v503 = vpop.f32.mrb[0].mxu0
      %504 = vmatprep.mubr.f32.mxu0 0.0
      %505 = vmatmul.mubr.f32.gmra.mrb[0].mxu0 %v293
      %v506 = vpop.f32.mrb[0].mxu0
      %v507 = vadd.f32 %v212, %v506
      %v508 = vpop.f32.mrb[0].mxu0
      %509 = vmatprep.mubr.f32.mxu0 0.0
      %510 = vmatmul.mubr.f32.gmra.mrb[0].mxu0 %v296
      %v511 = vpop.f32.mrb[0].mxu0
      %v512 = vadd.f32 %v212, %v511
      %v513 = vpop.f32.mrb[0].mxu0
      %514 = vmatprep.mubr.f32.mxu0 0.0
      %515 = vmatmul.mubr.f32.gmra.mrb[0].mxu0 %v299
      %v516 = vpop.f32.mrb[0].mxu0
      %v517 = vadd.f32 %v212, %v516
      %v518 = vpop.f32.mrb[0].mxu0
      %519 = vmatprep.mubr.f32.mxu0 0.0
      %520 = vmatmul.mubr.f32.gmra.mrb[0].mxu0 %v302
      %v521 = vpop.f32.mrb[0].mxu0
      %v522 = vadd.f32 %v212, %v521
      %v523 = vpop.f32.mrb[0].mxu0
      %524 = vmatprep.mubr.f32.mxu0 0.0
      %525 = vmatmul.mubr.f32.gmra.mrb[0].mxu0 %v305
      %v526 = vpop.f32.mrb[0].mxu0
      %v527 = vadd.f32 %v212, %v526
      %v528 = vpop.f32.mrb[0].mxu0
      %529 = vmatprep.mubr.f32.mxu0 0.0
      %530 = vmatmul.mubr.f32.gmra.mrb[0].mxu0 %v308
      %v531 = vpop.f32.mrb[0].mxu0
      %v532 = vadd.f32 %v212, %v531
      %v533 = vpop.f32.mrb[0].mxu0
      %534 = vdwg.mxu0
      %v535 = vtanh.pop %v377
      %v536 = vtanh.pop %v382
      %v537 = vtanh.pop %v387
      %v538 = vtanh.pop %v392
      %v539 = vtanh.pop %v397
      %v540 = vtanh.pop %v402
      %v541 = vtanh.pop %v407
      %v542 = vtanh.pop %v412
      %v543 = vtanh.pop %v417
      %v544 = vtanh.pop %v422
      %v545 = vtanh.pop %v427
      %v546 = vtanh.pop %v432
      %v547 = vtanh.pop %v437
      %v548 = vtanh.pop %v442
      %v549 = vtanh.pop %v447
      %v550 = vtanh.pop %v452
      %v551 = vtanh.pop %v457
      %v552 = vtanh.pop %v462
      %v553 = vtanh.pop %v467
      %v554 = vtanh.pop %v472
      %v555 = vtanh.pop %v477
      %v556 = vtanh.pop %v482
      %v557 = vtanh.pop %v487
      %v558 = vtanh.pop %v492
      %v559 = vtanh.pop %v497
      %v560 = vtanh.pop %v502
      %v561 = vtanh.pop %v507
      %v562 = vtanh.pop %v512
      %v563 = vtanh.pop %v517
      %v564 = vtanh.pop %v522
      %v565 = vtanh.pop %v527
      %v566 = vtanh.pop %v532
      %v567 = vpack.c.bf16 %v536, %v535
      %v568 = vpack.c.bf16 %v538, %v537
      %v569 = vpack.c.bf16 %v540, %v539
      %v570 = vpack.c.bf16 %v542, %v541
      %v571 = vpack.c.bf16 %v544, %v543
      %v572 = vpack.c.bf16 %v546, %v545
      %v573 = vpack.c.bf16 %v548, %v547
      %v574 = vpack.c.bf16 %v550, %v549
      %v575 = vpack.c.bf16 %v552, %v551
      %v576 = vpack.c.bf16 %v554, %v553
      %v577 = vpack.c.bf16 %v556, %v555
      %v578 = vpack.c.bf16 %v558, %v557
      %v579 = vpack.c.bf16 %v560, %v559
      %v580 = vpack.c.bf16 %v562, %v561
      %v581 = vpack.c.bf16 %v564, %v563
      %v582 = vpack.c.bf16 %v566, %v565
      %v583 = vld [vmem:[%s2] sm:$0xf]
      %v584 = vld [vmem:[%s2 + $0x4] sm:$0xf]
      %v585 = vld [vmem:[%s2 + $0x8] sm:$0xf]
      %v586 = vld [vmem:[%s2 + $0xc] sm:$0xf]
      %v587 = vld [vmem:[%s2 + $0x10] sm:$0xf]
      %v588 = vld [vmem:[%s2 + $0x14] sm:$0xf]
      %v589 = vld [vmem:[%s2 + $0x18] sm:$0xf]
      %v590 = vld [vmem:[%s2 + $0x1c] sm:$0xf]
      %v591 = vld [vmem:[%s2 + $0x20] sm:$0xf]
      %v592 = vld [vmem:[%s2 + $0x24] sm:$0xf]
      %v593 = vld [vmem:[%s2 + $0x28] sm:$0xf]
      %v594 = vld [vmem:[%s2 + $0x2c] sm:$0xf]
      %v595 = vld [vmem:[%s2 + $0x30] sm:$0xf]
      %v596 = vld [vmem:[%s2 + $0x34] sm:$0xf]
      %v597 = vld [vmem:[%s2 + $0x38] sm:$0xf]
      %v598 = vld [vmem:[%s2 + $0x3c] sm:$0xf]
      %v599 = vld [vmem:[%s1 + $0x9] sm:$0x1]
      %v600 = vlaneseq
      %v601 = vshrl.u32 %v600, 7
      %v602 = vsub.s32 0, %v601
      %v603 = vrot.slane %v599, %v602
      %v620 = vunpack.c.l.b16 %v583
      %v621 = vunpack.c.l.b16 %v584
      %v622 = vunpack.c.l.b16 %v585
      %v623 = vunpack.c.l.b16 %v586
      %v624 = vunpack.c.l.b16 %v587
      %v625 = vunpack.c.l.b16 %v588
      %v626 = vunpack.c.l.b16 %v589
      %v627 = vunpack.c.l.b16 %v590
      %v628 = vunpack.c.l.b16 %v591
      %v629 = vunpack.c.l.b16 %v592
      %v630 = vunpack.c.l.b16 %v593
      %v631 = vunpack.c.l.b16 %v594
      %v632 = vunpack.c.l.b16 %v595
      %v633 = vunpack.c.l.b16 %v596
      %v634 = vunpack.c.l.b16 %v597
      %v635 = vunpack.c.l.b16 %v598
      %v636 = vpack.c.b16 %v621, %v620
      %v637 = vpack.c.b16 %v623, %v622
      %v638 = vpack.c.b16 %v625, %v624
      %v639 = vpack.c.b16 %v627, %v626
      %v640 = vpack.c.b16 %v629, %v628
      %v641 = vpack.c.b16 %v631, %v630
      %v642 = vpack.c.b16 %v633, %v632
      %v643 = vpack.c.b16 %v635, %v634
      %652 = vmatprep.subr.bf16.mxu0 0
      %653 = vmatpush1.bf16.msra.mxu0 %v636
      %654 = vmatprep.subr.bf16.mxu0 0
      %655 = vmatpush1.bf16.msra.mxu0 %v637
      %656 = vmatprep.subr.bf16.mxu0 0
      %657 = vmatpush1.bf16.msra.mxu0 %v638
      %658 = vmatprep.subr.bf16.mxu0 0
      %659 = vmatpush1.bf16.msra.mxu0 %v639
      %660 = vmatprep.subr.bf16.mxu0 0
      %661 = vmatpush1.bf16.msra.mxu0 %v640
      %662 = vmatprep.subr.bf16.mxu0 0
      %663 = vmatpush1.bf16.msra.mxu0 %v641
      %664 = vmatprep.subr.bf16.mxu0 0
      %665 = vmatpush1.bf16.msra.mxu0 %v642
      %666 = vmatprep.subr.bf16.mxu0 0
      %667 = vmatpush1.bf16.msra.mxu0 %v643
      %668 = vmatprep.subr.bf16.mxu0 0
      %669 = vmatpush1.bf16.msra.mxu0 0
      %670 = vmatprep.subr.bf16.mxu0 0
      %671 = vmatpush1.bf16.msra.mxu0 0
      %672 = vmatprep.subr.bf16.mxu0 0
      %673 = vmatpush1.bf16.msra.mxu0 0
      %674 = vmatprep.subr.bf16.mxu0 0
      %675 = vmatpush1.bf16.msra.mxu0 0
      %676 = vmatprep.subr.bf16.mxu0 0
      %677 = vmatpush1.bf16.msra.mxu0 0
      %678 = vmatprep.subr.bf16.mxu0 0
      %679 = vmatpush1.bf16.msra.mxu0 0
      %680 = vmatprep.subr.bf16.mxu0 0
      %681 = vmatpush1.bf16.msra.mxu0 0
      %682 = vmatprep.subr.bf16.mxu0 0
      %683 = vmatpush1.bf16.msra.mxu0 0
      %684 = vmatprep.mubr.bf16.mxu0 0
      %685 = vmatmul.mubr.bf16.gmra.mrb[0].mxu0 %v567
      %v686 = vpop.f32.mrb[0].mxu0
      %v687 = vadd.f32 %v603, %v686
      %v688 = vpop.f32.mrb[0].mxu0
      %v689 = vpop.f32.mrb[0].mxu0
      %v690 = vadd.f32 %v603, %v689
      %v691 = vpop.f32.mrb[0].mxu0
      %692 = vmatprep.mubr.bf16.mxu0 0
      %693 = vmatmul.mubr.bf16.gmra.mrb[0].mxu0 %v568
      %v694 = vpop.f32.mrb[0].mxu0
      %v695 = vadd.f32 %v603, %v694
      %v696 = vpop.f32.mrb[0].mxu0
      %v697 = vpop.f32.mrb[0].mxu0
      %v698 = vadd.f32 %v603, %v697
      %v699 = vpop.f32.mrb[0].mxu0
      %700 = vmatprep.mubr.bf16.mxu0 0
      %701 = vmatmul.mubr.bf16.gmra.mrb[0].mxu0 %v569
      %v702 = vpop.f32.mrb[0].mxu0
      %v703 = vadd.f32 %v603, %v702
      %v704 = vpop.f32.mrb[0].mxu0
      %v705 = vpop.f32.mrb[0].mxu0
      %v706 = vadd.f32 %v603, %v705
      %v707 = vpop.f32.mrb[0].mxu0
      %708 = vmatprep.mubr.bf16.mxu0 0
      %709 = vmatmul.mubr.bf16.gmra.mrb[0].mxu0 %v570
      %v710 = vpop.f32.mrb[0].mxu0
      %v711 = vadd.f32 %v603, %v710
      %v712 = vpop.f32.mrb[0].mxu0
      %v713 = vpop.f32.mrb[0].mxu0
      %v714 = vadd.f32 %v603, %v713
      %v715 = vpop.f32.mrb[0].mxu0
      %716 = vmatprep.mubr.bf16.mxu0 0
      %717 = vmatmul.mubr.bf16.gmra.mrb[0].mxu0 %v571
      %v718 = vpop.f32.mrb[0].mxu0
      %v719 = vadd.f32 %v603, %v718
      %v720 = vpop.f32.mrb[0].mxu0
      %v721 = vpop.f32.mrb[0].mxu0
      %v722 = vadd.f32 %v603, %v721
      %v723 = vpop.f32.mrb[0].mxu0
      %724 = vmatprep.mubr.bf16.mxu0 0
      %725 = vmatmul.mubr.bf16.gmra.mrb[0].mxu0 %v572
      %v726 = vpop.f32.mrb[0].mxu0
      %v727 = vadd.f32 %v603, %v726
      %v728 = vpop.f32.mrb[0].mxu0
      %v729 = vpop.f32.mrb[0].mxu0
      %v730 = vadd.f32 %v603, %v729
      %v731 = vpop.f32.mrb[0].mxu0
      %732 = vmatprep.mubr.bf16.mxu0 0
      %733 = vmatmul.mubr.bf16.gmra.mrb[0].mxu0 %v573
      %v734 = vpop.f32.mrb[0].mxu0
      %v735 = vadd.f32 %v603, %v734
      %v736 = vpop.f32.mrb[0].mxu0
      %v737 = vpop.f32.mrb[0].mxu0
      %v738 = vadd.f32 %v603, %v737
      %v739 = vpop.f32.mrb[0].mxu0
      %740 = vmatprep.mubr.bf16.mxu0 0
      %741 = vmatmul.mubr.bf16.gmra.mrb[0].mxu0 %v574
      %v742 = vpop.f32.mrb[0].mxu0
      %v743 = vadd.f32 %v603, %v742
      %v744 = vpop.f32.mrb[0].mxu0
      %v745 = vpop.f32.mrb[0].mxu0
      %v746 = vadd.f32 %v603, %v745
      %v747 = vpop.f32.mrb[0].mxu0
      %748 = vmatprep.mubr.bf16.mxu0 0
      %749 = vmatmul.mubr.bf16.gmra.mrb[0].mxu0 %v575
      %v750 = vpop.f32.mrb[0].mxu0
      %v751 = vadd.f32 %v603, %v750
      %v752 = vpop.f32.mrb[0].mxu0
      %v753 = vpop.f32.mrb[0].mxu0
      %v754 = vadd.f32 %v603, %v753
      %v755 = vpop.f32.mrb[0].mxu0
      %756 = vmatprep.mubr.bf16.mxu0 0
      %757 = vmatmul.mubr.bf16.gmra.mrb[0].mxu0 %v576
      %v758 = vpop.f32.mrb[0].mxu0
      %v759 = vadd.f32 %v603, %v758
      %v760 = vpop.f32.mrb[0].mxu0
      %v761 = vpop.f32.mrb[0].mxu0
      %v762 = vadd.f32 %v603, %v761
      %v763 = vpop.f32.mrb[0].mxu0
      %764 = vmatprep.mubr.bf16.mxu0 0
      %765 = vmatmul.mubr.bf16.gmra.mrb[0].mxu0 %v577
      %v766 = vpop.f32.mrb[0].mxu0
      %v767 = vadd.f32 %v603, %v766
      %v768 = vpop.f32.mrb[0].mxu0
      %v769 = vpop.f32.mrb[0].mxu0
      %v770 = vadd.f32 %v603, %v769
      %v771 = vpop.f32.mrb[0].mxu0
      %772 = vmatprep.mubr.bf16.mxu0 0
      %773 = vmatmul.mubr.bf16.gmra.mrb[0].mxu0 %v578
      %v774 = vpop.f32.mrb[0].mxu0
      %v775 = vadd.f32 %v603, %v774
      %v776 = vpop.f32.mrb[0].mxu0
      %v777 = vpop.f32.mrb[0].mxu0
      %v778 = vadd.f32 %v603, %v777
      %v779 = vpop.f32.mrb[0].mxu0
      %780 = vmatprep.mubr.bf16.mxu0 0
      %781 = vmatmul.mubr.bf16.gmra.mrb[0].mxu0 %v579
      %v782 = vpop.f32.mrb[0].mxu0
      %v783 = vadd.f32 %v603, %v782
      %v784 = vpop.f32.mrb[0].mxu0
      %v785 = vpop.f32.mrb[0].mxu0
      %v786 = vadd.f32 %v603, %v785
      %v787 = vpop.f32.mrb[0].mxu0
      %788 = vmatprep.mubr.bf16.mxu0 0
      %789 = vmatmul.mubr.bf16.gmra.mrb[0].mxu0 %v580
      %v790 = vpop.f32.mrb[0].mxu0
      %v791 = vadd.f32 %v603, %v790
      %v792 = vpop.f32.mrb[0].mxu0
      %v793 = vpop.f32.mrb[0].mxu0
      %v794 = vadd.f32 %v603, %v793
      %v795 = vpop.f32.mrb[0].mxu0
      %796 = vmatprep.mubr.bf16.mxu0 0
      %797 = vmatmul.mubr.bf16.gmra.mrb[0].mxu0 %v581
      %v798 = vpop.f32.mrb[0].mxu0
      %v799 = vadd.f32 %v603, %v798
      %v800 = vpop.f32.mrb[0].mxu0
      %v801 = vpop.f32.mrb[0].mxu0
      %v802 = vadd.f32 %v603, %v801
      %v803 = vpop.f32.mrb[0].mxu0
      %804 = vmatprep.mubr.bf16.mxu0 0
      %805 = vmatmul.mubr.bf16.gmra.mrb[0].mxu0 %v582
      %v806 = vpop.f32.mrb[0].mxu0
      %v807 = vadd.f32 %v603, %v806
      %v808 = vpop.f32.mrb[0].mxu0
      %v809 = vpop.f32.mrb[0].mxu0
      %v810 = vadd.f32 %v603, %v809
      %v811 = vpop.f32.mrb[0].mxu0
      %812 = vdwg.mxu0
      %v813 = vtanh.pop %v687
      %v814 = vtanh.pop %v690
      %v815 = vtanh.pop %v695
      %v816 = vtanh.pop %v698
      %v817 = vtanh.pop %v703
      %v818 = vtanh.pop %v706
      %v819 = vtanh.pop %v711
      %v820 = vtanh.pop %v714
      %v821 = vtanh.pop %v719
      %v822 = vtanh.pop %v722
      %v823 = vtanh.pop %v727
      %v824 = vtanh.pop %v730
      %v825 = vtanh.pop %v735
      %v826 = vtanh.pop %v738
      %v827 = vtanh.pop %v743
      %v828 = vtanh.pop %v746
      %v829 = vtanh.pop %v751
      %v830 = vtanh.pop %v754
      %v831 = vtanh.pop %v759
      %v832 = vtanh.pop %v762
      %v833 = vtanh.pop %v767
      %v834 = vtanh.pop %v770
      %v835 = vtanh.pop %v775
      %v836 = vtanh.pop %v778
      %v837 = vtanh.pop %v783
      %v838 = vtanh.pop %v786
      %v839 = vtanh.pop %v791
      %v840 = vtanh.pop %v794
      %v841 = vtanh.pop %v799
      %v842 = vtanh.pop %v802
      %v843 = vtanh.pop %v807
      %v844 = vtanh.pop %v810
      %v845 = vpack.c.bf16 %v814, %v813
      %v846 = vpack.c.bf16 %v816, %v815
      %v847 = vpack.c.bf16 %v818, %v817
      %v848 = vpack.c.bf16 %v820, %v819
      %v849 = vpack.c.bf16 %v822, %v821
      %v850 = vpack.c.bf16 %v824, %v823
      %v851 = vpack.c.bf16 %v826, %v825
      %v852 = vpack.c.bf16 %v828, %v827
      %v853 = vpack.c.bf16 %v830, %v829
      %v854 = vpack.c.bf16 %v832, %v831
      %v855 = vpack.c.bf16 %v834, %v833
      %v856 = vpack.c.bf16 %v836, %v835
      %v857 = vpack.c.bf16 %v838, %v837
      %v858 = vpack.c.bf16 %v840, %v839
      %v859 = vpack.c.bf16 %v842, %v841
      %v860 = vpack.c.bf16 %v844, %v843
      %v861 = vld [vmem:[%s2 + $0x40] sm:$0xf]
      %v862 = vld [vmem:[%s2 + $0x44] sm:$0xf]
      %v863 = vld [vmem:[%s2 + $0x48] sm:$0xf]
      %v864 = vld [vmem:[%s2 + $0x4c] sm:$0xf]
      %v865 = vld [vmem:[%s2 + $0x50] sm:$0xf]
      %v866 = vld [vmem:[%s2 + $0x54] sm:$0xf]
      %v867 = vld [vmem:[%s2 + $0x58] sm:$0xf]
      %v868 = vld [vmem:[%s2 + $0x5c] sm:$0xf]
      %v869 = vld [vmem:[%s2 + $0x60] sm:$0xf]
      %v870 = vld [vmem:[%s2 + $0x64] sm:$0xf]
      %v871 = vld [vmem:[%s2 + $0x68] sm:$0xf]
      %v872 = vld [vmem:[%s2 + $0x6c] sm:$0xf]
      %v873 = vld [vmem:[%s2 + $0x70] sm:$0xf]
      %v874 = vld [vmem:[%s2 + $0x74] sm:$0xf]
      %v875 = vld [vmem:[%s2 + $0x78] sm:$0xf]
      %v876 = vld [vmem:[%s2 + $0x7c] sm:$0xf]
      %v877 = vld [vmem:[%s1 + $0xa] sm:$0x1]
      %v878 = vlaneseq
      %v879 = vshrl.u32 %v878, 7
      %v880 = vsub.s32 0, %v879
      %v881 = vrot.slane %v877, %v880
      %v898 = vunpack.c.l.b16 %v861
      %v899 = vunpack.c.l.b16 %v862
      %v900 = vunpack.c.l.b16 %v863
      %v901 = vunpack.c.l.b16 %v864
      %v902 = vunpack.c.l.b16 %v865
      %v903 = vunpack.c.l.b16 %v866
      %v904 = vunpack.c.l.b16 %v867
      %v905 = vunpack.c.l.b16 %v868
      %v906 = vunpack.c.l.b16 %v869
      %v907 = vunpack.c.l.b16 %v870
      %v908 = vunpack.c.l.b16 %v871
      %v909 = vunpack.c.l.b16 %v872
      %v910 = vunpack.c.l.b16 %v873
      %v911 = vunpack.c.l.b16 %v874
      %v912 = vunpack.c.l.b16 %v875
      %v913 = vunpack.c.l.b16 %v876
      %v914 = vpack.c.b16 %v899, %v898
      %v915 = vpack.c.b16 %v901, %v900
      %v916 = vpack.c.b16 %v903, %v902
      %v917 = vpack.c.b16 %v905, %v904
      %v918 = vpack.c.b16 %v907, %v906
      %v919 = vpack.c.b16 %v909, %v908
      %v920 = vpack.c.b16 %v911, %v910
      %v921 = vpack.c.b16 %v913, %v912
      %930 = vmatprep.subr.bf16.mxu0 0
      %931 = vmatpush1.bf16.msra.mxu0 %v914
      %932 = vmatprep.subr.bf16.mxu0 0
      %933 = vmatpush1.bf16.msra.mxu0 %v915
      %934 = vmatprep.subr.bf16.mxu0 0
      %935 = vmatpush1.bf16.msra.mxu0 %v916
      %936 = vmatprep.subr.bf16.mxu0 0
      %937 = vmatpush1.bf16.msra.mxu0 %v917
      %938 = vmatprep.subr.bf16.mxu0 0
      %939 = vmatpush1.bf16.msra.mxu0 %v918
      %940 = vmatprep.subr.bf16.mxu0 0
      %941 = vmatpush1.bf16.msra.mxu0 %v919
      %942 = vmatprep.subr.bf16.mxu0 0
      %943 = vmatpush1.bf16.msra.mxu0 %v920
      %944 = vmatprep.subr.bf16.mxu0 0
      %945 = vmatpush1.bf16.msra.mxu0 %v921
      %946 = vmatprep.subr.bf16.mxu0 0
      %947 = vmatpush1.bf16.msra.mxu0 0
      %948 = vmatprep.subr.bf16.mxu0 0
      %949 = vmatpush1.bf16.msra.mxu0 0
      %950 = vmatprep.subr.bf16.mxu0 0
      %951 = vmatpush1.bf16.msra.mxu0 0
      %952 = vmatprep.subr.bf16.mxu0 0
      %953 = vmatpush1.bf16.msra.mxu0 0
      %954 = vmatprep.subr.bf16.mxu0 0
      %955 = vmatpush1.bf16.msra.mxu0 0
      %956 = vmatprep.subr.bf16.mxu0 0
      %957 = vmatpush1.bf16.msra.mxu0 0
      %958 = vmatprep.subr.bf16.mxu0 0
      %959 = vmatpush1.bf16.msra.mxu0 0
      %960 = vmatprep.subr.bf16.mxu0 0
      %961 = vmatpush1.bf16.msra.mxu0 0
      %962 = vmatprep.mubr.bf16.mxu0 0
      %963 = vmatmul.mubr.bf16.gmra.mrb[0].mxu0 %v845
      %v964 = vpop.f32.mrb[0].mxu0
      %v965 = vadd.f32 %v881, %v964
      %v966 = vpop.f32.mrb[0].mxu0
      %v967 = vpop.f32.mrb[0].mxu0
      %v968 = vadd.f32 %v881, %v967
      %v969 = vpop.f32.mrb[0].mxu0
      %970 = vmatprep.mubr.bf16.mxu0 0
      %971 = vmatmul.mubr.bf16.gmra.mrb[0].mxu0 %v846
      %v972 = vpop.f32.mrb[0].mxu0
      %v973 = vadd.f32 %v881, %v972
      %v974 = vpop.f32.mrb[0].mxu0
      %v975 = vpop.f32.mrb[0].mxu0
      %v976 = vadd.f32 %v881, %v975
      %v977 = vpop.f32.mrb[0].mxu0
      %978 = vmatprep.mubr.bf16.mxu0 0
      %979 = vmatmul.mubr.bf16.gmra.mrb[0].mxu0 %v847
      %v980 = vpop.f32.mrb[0].mxu0
      %v981 = vadd.f32 %v881, %v980
      %v982 = vpop.f32.mrb[0].mxu0
      %v983 = vpop.f32.mrb[0].mxu0
      %v984 = vadd.f32 %v881, %v983
      %v985 = vpop.f32.mrb[0].mxu0
      %986 = vmatprep.mubr.bf16.mxu0 0
      %987 = vmatmul.mubr.bf16.gmra.mrb[0].mxu0 %v848
      %v988 = vpop.f32.mrb[0].mxu0
      %v989 = vadd.f32 %v881, %v988
      %v990 = vpop.f32.mrb[0].mxu0
      %v991 = vpop.f32.mrb[0].mxu0
      %v992 = vadd.f32 %v881, %v991
      %v993 = vpop.f32.mrb[0].mxu0
      %994 = vmatprep.mubr.bf16.mxu0 0
      %995 = vmatmul.mubr.bf16.gmra.mrb[0].mxu0 %v849
      %v996 = vpop.f32.mrb[0].mxu0
      %v997 = vadd.f32 %v881, %v996
      %v998 = vpop.f32.mrb[0].mxu0
      %v999 = vpop.f32.mrb[0].mxu0
      %v1000 = vadd.f32 %v881, %v999
      %v1001 = vpop.f32.mrb[0].mxu0
      %1002 = vmatprep.mubr.bf16.mxu0 0
      %1003 = vmatmul.mubr.bf16.gmra.mrb[0].mxu0 %v850
      %v1004 = vpop.f32.mrb[0].mxu0
      %v1005 = vadd.f32 %v881, %v1004
      %v1006 = vpop.f32.mrb[0].mxu0
      %v1007 = vpop.f32.mrb[0].mxu0
      %v1008 = vadd.f32 %v881, %v1007
      %v1009 = vpop.f32.mrb[0].mxu0
      %1010 = vmatprep.mubr.bf16.mxu0 0
      %1011 = vmatmul.mubr.bf16.gmra.mrb[0].mxu0 %v851
      %v1012 = vpop.f32.mrb[0].mxu0
      %v1013 = vadd.f32 %v881, %v1012
      %v1014 = vpop.f32.mrb[0].mxu0
      %v1015 = vpop.f32.mrb[0].mxu0
      %v1016 = vadd.f32 %v881, %v1015
      %v1017 = vpop.f32.mrb[0].mxu0
      %1018 = vmatprep.mubr.bf16.mxu0 0
      %1019 = vmatmul.mubr.bf16.gmra.mrb[0].mxu0 %v852
      %v1020 = vpop.f32.mrb[0].mxu0
      %v1021 = vadd.f32 %v881, %v1020
      %v1022 = vpop.f32.mrb[0].mxu0
      %v1023 = vpop.f32.mrb[0].mxu0
      %v1024 = vadd.f32 %v881, %v1023
      %v1025 = vpop.f32.mrb[0].mxu0
      %1026 = vmatprep.mubr.bf16.mxu0 0
      %1027 = vmatmul.mubr.bf16.gmra.mrb[0].mxu0 %v853
      %v1028 = vpop.f32.mrb[0].mxu0
      %v1029 = vadd.f32 %v881, %v1028
      %v1030 = vpop.f32.mrb[0].mxu0
      %v1031 = vpop.f32.mrb[0].mxu0
      %v1032 = vadd.f32 %v881, %v1031
      %v1033 = vpop.f32.mrb[0].mxu0
      %1034 = vmatprep.mubr.bf16.mxu0 0
      %1035 = vmatmul.mubr.bf16.gmra.mrb[0].mxu0 %v854
      %v1036 = vpop.f32.mrb[0].mxu0
      %v1037 = vadd.f32 %v881, %v1036
      %v1038 = vpop.f32.mrb[0].mxu0
      %v1039 = vpop.f32.mrb[0].mxu0
      %v1040 = vadd.f32 %v881, %v1039
      %v1041 = vpop.f32.mrb[0].mxu0
      %1042 = vmatprep.mubr.bf16.mxu0 0
      %1043 = vmatmul.mubr.bf16.gmra.mrb[0].mxu0 %v855
      %v1044 = vpop.f32.mrb[0].mxu0
      %v1045 = vadd.f32 %v881, %v1044
      %v1046 = vpop.f32.mrb[0].mxu0
      %v1047 = vpop.f32.mrb[0].mxu0
      %v1048 = vadd.f32 %v881, %v1047
      %v1049 = vpop.f32.mrb[0].mxu0
      %1050 = vmatprep.mubr.bf16.mxu0 0
      %1051 = vmatmul.mubr.bf16.gmra.mrb[0].mxu0 %v856
      %v1052 = vpop.f32.mrb[0].mxu0
      %v1053 = vadd.f32 %v881, %v1052
      %v1054 = vpop.f32.mrb[0].mxu0
      %v1055 = vpop.f32.mrb[0].mxu0
      %v1056 = vadd.f32 %v881, %v1055
      %v1057 = vpop.f32.mrb[0].mxu0
      %1058 = vmatprep.mubr.bf16.mxu0 0
      %1059 = vmatmul.mubr.bf16.gmra.mrb[0].mxu0 %v857
      %v1060 = vpop.f32.mrb[0].mxu0
      %v1061 = vadd.f32 %v881, %v1060
      %v1062 = vpop.f32.mrb[0].mxu0
      %v1063 = vpop.f32.mrb[0].mxu0
      %v1064 = vadd.f32 %v881, %v1063
      %v1065 = vpop.f32.mrb[0].mxu0
      %1066 = vmatprep.mubr.bf16.mxu0 0
      %1067 = vmatmul.mubr.bf16.gmra.mrb[0].mxu0 %v858
      %v1068 = vpop.f32.mrb[0].mxu0
      %v1069 = vadd.f32 %v881, %v1068
      %v1070 = vpop.f32.mrb[0].mxu0
      %v1071 = vpop.f32.mrb[0].mxu0
      %v1072 = vadd.f32 %v881, %v1071
      %v1073 = vpop.f32.mrb[0].mxu0
      %1074 = vmatprep.mubr.bf16.mxu0 0
      %1075 = vmatmul.mubr.bf16.gmra.mrb[0].mxu0 %v859
      %v1076 = vpop.f32.mrb[0].mxu0
      %v1077 = vadd.f32 %v881, %v1076
      %v1078 = vpop.f32.mrb[0].mxu0
      %v1079 = vpop.f32.mrb[0].mxu0
      %v1080 = vadd.f32 %v881, %v1079
      %v1081 = vpop.f32.mrb[0].mxu0
      %1082 = vmatprep.mubr.bf16.mxu0 0
      %1083 = vmatmul.mubr.bf16.gmra.mrb[0].mxu0 %v860
      %v1084 = vpop.f32.mrb[0].mxu0
      %v1085 = vadd.f32 %v881, %v1084
      %v1086 = vpop.f32.mrb[0].mxu0
      %v1087 = vpop.f32.mrb[0].mxu0
      %v1088 = vadd.f32 %v881, %v1087
      %v1089 = vpop.f32.mrb[0].mxu0
      %1090 = vdwg.mxu0
      %vm1091 = vcmask 31744
      %v1092 = vsel %vm1091, %v965, -inf
      %1093 = vmax.xlane.f32.xlu0 %v1092
      %v1094 = vpop.xlane.xlu0 %1093
      %v1095 = vsel %vm1091, %v968, -inf
      %1096 = vmax.xlane.f32.xlu0 %v1095
      %v1097 = vpop.xlane.xlu0 %1096
      %v1098 = vsel %vm1091, %v973, -inf
      %1099 = vmax.xlane.f32.xlu0 %v1098
      %v1100 = vpop.xlane.xlu0 %1099
      %v1101 = vsel %vm1091, %v976, -inf
      %1102 = vmax.xlane.f32.xlu0 %v1101
      %v1103 = vpop.xlane.xlu0 %1102
      %v1104 = vsel %vm1091, %v981, -inf
      %1105 = vmax.xlane.f32.xlu0 %v1104
      %v1106 = vpop.xlane.xlu0 %1105
      %v1107 = vsel %vm1091, %v984, -inf
      %1108 = vmax.xlane.f32.xlu0 %v1107
      %v1109 = vpop.xlane.xlu0 %1108
      %v1110 = vsel %vm1091, %v989, -inf
      %1111 = vmax.xlane.f32.xlu0 %v1110
      %v1112 = vpop.xlane.xlu0 %1111
      %v1113 = vsel %vm1091, %v992, -inf
      %1114 = vmax.xlane.f32.xlu0 %v1113
      %v1115 = vpop.xlane.xlu0 %1114
      %v1116 = vsel %vm1091, %v997, -inf
      %1117 = vmax.xlane.f32.xlu0 %v1116
      %v1118 = vpop.xlane.xlu0 %1117
      %v1119 = vsel %vm1091, %v1000, -inf
      %1120 = vmax.xlane.f32.xlu0 %v1119
      %v1121 = vpop.xlane.xlu0 %1120
      %v1122 = vsel %vm1091, %v1005, -inf
      %1123 = vmax.xlane.f32.xlu0 %v1122
      %v1124 = vpop.xlane.xlu0 %1123
      %v1125 = vsel %vm1091, %v1008, -inf
      %1126 = vmax.xlane.f32.xlu0 %v1125
      %v1127 = vpop.xlane.xlu0 %1126
      %v1128 = vsel %vm1091, %v1013, -inf
      %1129 = vmax.xlane.f32.xlu0 %v1128
      %v1130 = vpop.xlane.xlu0 %1129
      %v1131 = vsel %vm1091, %v1016, -inf
      %1132 = vmax.xlane.f32.xlu0 %v1131
      %v1133 = vpop.xlane.xlu0 %1132
      %v1134 = vsel %vm1091, %v1021, -inf
      %1135 = vmax.xlane.f32.xlu0 %v1134
      %v1136 = vpop.xlane.xlu0 %1135
      %v1137 = vsel %vm1091, %v1024, -inf
      %1138 = vmax.xlane.f32.xlu0 %v1137
      %v1139 = vpop.xlane.xlu0 %1138
      %v1140 = vsel %vm1091, %v1029, -inf
      %1141 = vmax.xlane.f32.xlu0 %v1140
      %v1142 = vpop.xlane.xlu0 %1141
      %v1143 = vsel %vm1091, %v1032, -inf
      %1144 = vmax.xlane.f32.xlu0 %v1143
      %v1145 = vpop.xlane.xlu0 %1144
      %v1146 = vsel %vm1091, %v1037, -inf
      %1147 = vmax.xlane.f32.xlu0 %v1146
      %v1148 = vpop.xlane.xlu0 %1147
      %v1149 = vsel %vm1091, %v1040, -inf
      %1150 = vmax.xlane.f32.xlu0 %v1149
      %v1151 = vpop.xlane.xlu0 %1150
      %v1152 = vsel %vm1091, %v1045, -inf
      %1153 = vmax.xlane.f32.xlu0 %v1152
      %v1154 = vpop.xlane.xlu0 %1153
      %v1155 = vsel %vm1091, %v1048, -inf
      %1156 = vmax.xlane.f32.xlu0 %v1155
      %v1157 = vpop.xlane.xlu0 %1156
      %v1158 = vsel %vm1091, %v1053, -inf
      %1159 = vmax.xlane.f32.xlu0 %v1158
      %v1160 = vpop.xlane.xlu0 %1159
      %v1161 = vsel %vm1091, %v1056, -inf
      %1162 = vmax.xlane.f32.xlu0 %v1161
      %v1163 = vpop.xlane.xlu0 %1162
      %v1164 = vsel %vm1091, %v1061, -inf
      %1165 = vmax.xlane.f32.xlu0 %v1164
      %v1166 = vpop.xlane.xlu0 %1165
      %v1167 = vsel %vm1091, %v1064, -inf
      %1168 = vmax.xlane.f32.xlu0 %v1167
      %v1169 = vpop.xlane.xlu0 %1168
      %v1170 = vsel %vm1091, %v1069, -inf
      %1171 = vmax.xlane.f32.xlu0 %v1170
      %v1172 = vpop.xlane.xlu0 %1171
      %v1173 = vsel %vm1091, %v1072, -inf
      %1174 = vmax.xlane.f32.xlu0 %v1173
      %v1175 = vpop.xlane.xlu0 %1174
      %v1176 = vsel %vm1091, %v1077, -inf
      %1177 = vmax.xlane.f32.xlu0 %v1176
      %v1178 = vpop.xlane.xlu0 %1177
      %v1179 = vsel %vm1091, %v1080, -inf
      %1180 = vmax.xlane.f32.xlu0 %v1179
      %v1181 = vpop.xlane.xlu0 %1180
      %v1182 = vsel %vm1091, %v1085, -inf
      %1183 = vmax.xlane.f32.xlu0 %v1182
      %v1184 = vpop.xlane.xlu0 %1183
      %v1185 = vsel %vm1091, %v1088, -inf
      %1186 = vmax.xlane.f32.xlu0 %v1185
      %v1187 = vpop.xlane.xlu0 %1186
      %v1188 = vsub.f32 %v965, %v1094
      %v1189 = vsub.f32 %v968, %v1097
      %v1190 = vsub.f32 %v973, %v1100
      %v1191 = vsub.f32 %v976, %v1103
      %v1192 = vsub.f32 %v981, %v1106
      %v1193 = vsub.f32 %v984, %v1109
      %v1194 = vsub.f32 %v989, %v1112
      %v1195 = vsub.f32 %v992, %v1115
      %v1196 = vsub.f32 %v997, %v1118
      %v1197 = vsub.f32 %v1000, %v1121
      %v1198 = vsub.f32 %v1005, %v1124
      %v1199 = vsub.f32 %v1008, %v1127
      %v1200 = vsub.f32 %v1013, %v1130
      %v1201 = vsub.f32 %v1016, %v1133
      %v1202 = vsub.f32 %v1021, %v1136
      %v1203 = vsub.f32 %v1024, %v1139
      %v1204 = vsub.f32 %v1029, %v1142
      %v1205 = vsub.f32 %v1032, %v1145
      %v1206 = vsub.f32 %v1037, %v1148
      %v1207 = vsub.f32 %v1040, %v1151
      %v1208 = vsub.f32 %v1045, %v1154
      %v1209 = vsub.f32 %v1048, %v1157
      %v1210 = vsub.f32 %v1053, %v1160
      %v1211 = vsub.f32 %v1056, %v1163
      %v1212 = vsub.f32 %v1061, %v1166
      %v1213 = vsub.f32 %v1064, %v1169
      %v1214 = vsub.f32 %v1069, %v1172
      %v1215 = vsub.f32 %v1072, %v1175
      %v1216 = vsub.f32 %v1077, %v1178
      %v1217 = vsub.f32 %v1080, %v1181
      %v1218 = vsub.f32 %v1085, %v1184
      %v1219 = vsub.f32 %v1088, %v1187
      %v1220 = vmul.f32 %v1188, 1.442695
      %v1221 = vpow.pop %v1220
      %v1222 = vmul.f32 %v1189, 1.442695
      %v1223 = vpow.pop %v1222
      %v1224 = vmul.f32 %v1190, 1.442695
      %v1225 = vpow.pop %v1224
      %v1226 = vmul.f32 %v1191, 1.442695
      %v1227 = vpow.pop %v1226
      %v1228 = vmul.f32 %v1192, 1.442695
      %v1229 = vpow.pop %v1228
      %v1230 = vmul.f32 %v1193, 1.442695
      %v1231 = vpow.pop %v1230
      %v1232 = vmul.f32 %v1194, 1.442695
      %v1233 = vpow.pop %v1232
      %v1234 = vmul.f32 %v1195, 1.442695
      %v1235 = vpow.pop %v1234
      %v1236 = vmul.f32 %v1196, 1.442695
      %v1237 = vpow.pop %v1236
      %v1238 = vmul.f32 %v1197, 1.442695
      %v1239 = vpow.pop %v1238
      %v1240 = vmul.f32 %v1198, 1.442695
      %v1241 = vpow.pop %v1240
      %v1242 = vmul.f32 %v1199, 1.442695
      %v1243 = vpow.pop %v1242
      %v1244 = vmul.f32 %v1200, 1.442695
      %v1245 = vpow.pop %v1244
      %v1246 = vmul.f32 %v1201, 1.442695
      %v1247 = vpow.pop %v1246
      %v1248 = vmul.f32 %v1202, 1.442695
      %v1249 = vpow.pop %v1248
      %v1250 = vmul.f32 %v1203, 1.442695
      %v1251 = vpow.pop %v1250
      %v1252 = vmul.f32 %v1204, 1.442695
      %v1253 = vpow.pop %v1252
      %v1254 = vmul.f32 %v1205, 1.442695
      %v1255 = vpow.pop %v1254
      %v1256 = vmul.f32 %v1206, 1.442695
      %v1257 = vpow.pop %v1256
      %v1258 = vmul.f32 %v1207, 1.442695
      %v1259 = vpow.pop %v1258
      %v1260 = vmul.f32 %v1208, 1.442695
      %v1261 = vpow.pop %v1260
      %v1262 = vmul.f32 %v1209, 1.442695
      %v1263 = vpow.pop %v1262
      %v1264 = vmul.f32 %v1210, 1.442695
      %v1265 = vpow.pop %v1264
      %v1266 = vmul.f32 %v1211, 1.442695
      %v1267 = vpow.pop %v1266
      %v1268 = vmul.f32 %v1212, 1.442695
      %v1269 = vpow.pop %v1268
      %v1270 = vmul.f32 %v1213, 1.442695
      %v1271 = vpow.pop %v1270
      %v1272 = vmul.f32 %v1214, 1.442695
      %v1273 = vpow.pop %v1272
      %v1274 = vmul.f32 %v1215, 1.442695
      %v1275 = vpow.pop %v1274
      %v1276 = vmul.f32 %v1216, 1.442695
      %v1277 = vpow.pop %v1276
      %v1278 = vmul.f32 %v1217, 1.442695
      %v1279 = vpow.pop %v1278
      %v1280 = vmul.f32 %v1218, 1.442695
      %v1281 = vpow.pop %v1280
      %v1282 = vmul.f32 %v1219, 1.442695
      %v1283 = vpow.pop %v1282
      %v1284 = vsel %vm1091, %v1221, 0.0
      %1285 = vadd.xlane.f32.xlu0 %v1284
      %v1286 = vpop.xlane.xlu0 %1285
      %v1287 = vsel %vm1091, %v1223, 0.0
      %1288 = vadd.xlane.f32.xlu0 %v1287
      %v1289 = vpop.xlane.xlu0 %1288
      %v1290 = vsel %vm1091, %v1225, 0.0
      %1291 = vadd.xlane.f32.xlu0 %v1290
      %v1292 = vpop.xlane.xlu0 %1291
      %v1293 = vsel %vm1091, %v1227, 0.0
      %1294 = vadd.xlane.f32.xlu0 %v1293
      %v1295 = vpop.xlane.xlu0 %1294
      %v1296 = vsel %vm1091, %v1229, 0.0
      %1297 = vadd.xlane.f32.xlu0 %v1296
      %v1298 = vpop.xlane.xlu0 %1297
      %v1299 = vsel %vm1091, %v1231, 0.0
      %1300 = vadd.xlane.f32.xlu0 %v1299
      %v1301 = vpop.xlane.xlu0 %1300
      %v1302 = vsel %vm1091, %v1233, 0.0
      %1303 = vadd.xlane.f32.xlu0 %v1302
      %v1304 = vpop.xlane.xlu0 %1303
      %v1305 = vsel %vm1091, %v1235, 0.0
      %1306 = vadd.xlane.f32.xlu0 %v1305
      %v1307 = vpop.xlane.xlu0 %1306
      %v1308 = vsel %vm1091, %v1237, 0.0
      %1309 = vadd.xlane.f32.xlu0 %v1308
      %v1310 = vpop.xlane.xlu0 %1309
      %v1311 = vsel %vm1091, %v1239, 0.0
      %1312 = vadd.xlane.f32.xlu0 %v1311
      %v1313 = vpop.xlane.xlu0 %1312
      %v1314 = vsel %vm1091, %v1241, 0.0
      %1315 = vadd.xlane.f32.xlu0 %v1314
      %v1316 = vpop.xlane.xlu0 %1315
      %v1317 = vsel %vm1091, %v1243, 0.0
      %1318 = vadd.xlane.f32.xlu0 %v1317
      %v1319 = vpop.xlane.xlu0 %1318
      %v1320 = vsel %vm1091, %v1245, 0.0
      %1321 = vadd.xlane.f32.xlu0 %v1320
      %v1322 = vpop.xlane.xlu0 %1321
      %v1323 = vsel %vm1091, %v1247, 0.0
      %1324 = vadd.xlane.f32.xlu0 %v1323
      %v1325 = vpop.xlane.xlu0 %1324
      %v1326 = vsel %vm1091, %v1249, 0.0
      %1327 = vadd.xlane.f32.xlu0 %v1326
      %v1328 = vpop.xlane.xlu0 %1327
      %v1329 = vsel %vm1091, %v1251, 0.0
      %1330 = vadd.xlane.f32.xlu0 %v1329
      %v1331 = vpop.xlane.xlu0 %1330
      %v1332 = vsel %vm1091, %v1253, 0.0
      %1333 = vadd.xlane.f32.xlu0 %v1332
      %v1334 = vpop.xlane.xlu0 %1333
      %v1335 = vsel %vm1091, %v1255, 0.0
      %1336 = vadd.xlane.f32.xlu0 %v1335
      %v1337 = vpop.xlane.xlu0 %1336
      %v1338 = vsel %vm1091, %v1257, 0.0
      %1339 = vadd.xlane.f32.xlu0 %v1338
      %v1340 = vpop.xlane.xlu0 %1339
      %v1341 = vsel %vm1091, %v1259, 0.0
      %1342 = vadd.xlane.f32.xlu0 %v1341
      %v1343 = vpop.xlane.xlu0 %1342
      %v1344 = vsel %vm1091, %v1261, 0.0
      %1345 = vadd.xlane.f32.xlu0 %v1344
      %v1346 = vpop.xlane.xlu0 %1345
      %v1347 = vsel %vm1091, %v1263, 0.0
      %1348 = vadd.xlane.f32.xlu0 %v1347
      %v1349 = vpop.xlane.xlu0 %1348
      %v1350 = vsel %vm1091, %v1265, 0.0
      %1351 = vadd.xlane.f32.xlu0 %v1350
      %v1352 = vpop.xlane.xlu0 %1351
      %v1353 = vsel %vm1091, %v1267, 0.0
      %1354 = vadd.xlane.f32.xlu0 %v1353
      %v1355 = vpop.xlane.xlu0 %1354
      %v1356 = vsel %vm1091, %v1269, 0.0
      %1357 = vadd.xlane.f32.xlu0 %v1356
      %v1358 = vpop.xlane.xlu0 %1357
      %v1359 = vsel %vm1091, %v1271, 0.0
      %1360 = vadd.xlane.f32.xlu0 %v1359
      %v1361 = vpop.xlane.xlu0 %1360
      %v1362 = vsel %vm1091, %v1273, 0.0
      %1363 = vadd.xlane.f32.xlu0 %v1362
      %v1364 = vpop.xlane.xlu0 %1363
      %v1365 = vsel %vm1091, %v1275, 0.0
      %1366 = vadd.xlane.f32.xlu0 %v1365
      %v1367 = vpop.xlane.xlu0 %1366
      %v1368 = vsel %vm1091, %v1277, 0.0
      %1369 = vadd.xlane.f32.xlu0 %v1368
      %v1370 = vpop.xlane.xlu0 %1369
      %v1371 = vsel %vm1091, %v1279, 0.0
      %1372 = vadd.xlane.f32.xlu0 %v1371
      %v1373 = vpop.xlane.xlu0 %1372
      %v1374 = vsel %vm1091, %v1281, 0.0
      %1375 = vadd.xlane.f32.xlu0 %v1374
      %v1376 = vpop.xlane.xlu0 %1375
      %v1377 = vsel %vm1091, %v1283, 0.0
      %1378 = vadd.xlane.f32.xlu0 %v1377
      %v1379 = vpop.xlane.xlu0 %1378
      %v1380 = vrcp.pop %v1286
      %v1381 = vmul.f32 %v1221, %v1380
      %v1382 = vrcp.pop %v1289
      %v1383 = vmul.f32 %v1223, %v1382
      %v1384 = vrcp.pop %v1292
      %v1385 = vmul.f32 %v1225, %v1384
      %v1386 = vrcp.pop %v1295
      %v1387 = vmul.f32 %v1227, %v1386
      %v1388 = vrcp.pop %v1298
      %v1389 = vmul.f32 %v1229, %v1388
      %v1390 = vrcp.pop %v1301
      %v1391 = vmul.f32 %v1231, %v1390
      %v1392 = vrcp.pop %v1304
      %v1393 = vmul.f32 %v1233, %v1392
      %v1394 = vrcp.pop %v1307
      %v1395 = vmul.f32 %v1235, %v1394
      %v1396 = vrcp.pop %v1310
      %v1397 = vmul.f32 %v1237, %v1396
      %v1398 = vrcp.pop %v1313
      %v1399 = vmul.f32 %v1239, %v1398
      %v1400 = vrcp.pop %v1316
      %v1401 = vmul.f32 %v1241, %v1400
      %v1402 = vrcp.pop %v1319
      %v1403 = vmul.f32 %v1243, %v1402
      %v1404 = vrcp.pop %v1322
      %v1405 = vmul.f32 %v1245, %v1404
      %v1406 = vrcp.pop %v1325
      %v1407 = vmul.f32 %v1247, %v1406
      %v1408 = vrcp.pop %v1328
      %v1409 = vmul.f32 %v1249, %v1408
      %v1410 = vrcp.pop %v1331
      %v1411 = vmul.f32 %v1251, %v1410
      %v1412 = vrcp.pop %v1334
      %v1413 = vmul.f32 %v1253, %v1412
      %v1414 = vrcp.pop %v1337
      %v1415 = vmul.f32 %v1255, %v1414
      %v1416 = vrcp.pop %v1340
      %v1417 = vmul.f32 %v1257, %v1416
      %v1418 = vrcp.pop %v1343
      %v1419 = vmul.f32 %v1259, %v1418
      %v1420 = vrcp.pop %v1346
      %v1421 = vmul.f32 %v1261, %v1420
      %v1422 = vrcp.pop %v1349
      %v1423 = vmul.f32 %v1263, %v1422
      %v1424 = vrcp.pop %v1352
      %v1425 = vmul.f32 %v1265, %v1424
      %v1426 = vrcp.pop %v1355
      %v1427 = vmul.f32 %v1267, %v1426
      %v1428 = vrcp.pop %v1358
      %v1429 = vmul.f32 %v1269, %v1428
      %v1430 = vrcp.pop %v1361
      %v1431 = vmul.f32 %v1271, %v1430
      %v1432 = vrcp.pop %v1364
      %v1433 = vmul.f32 %v1273, %v1432
      %v1434 = vrcp.pop %v1367
      %v1435 = vmul.f32 %v1275, %v1434
      %v1436 = vrcp.pop %v1370
      %v1437 = vmul.f32 %v1277, %v1436
      %v1438 = vrcp.pop %v1373
      %v1439 = vmul.f32 %v1279, %v1438
      %v1440 = vrcp.pop %v1376
      %v1441 = vmul.f32 %v1281, %v1440
      %v1442 = vrcp.pop %v1379
      %v1443 = vmul.f32 %v1283, %v1442
      %1444 = vst.msk [vmem:[%s172] sm:$0xff] %vm1091, %v1381
      %1445 = vst.msk [vmem:[%s172 + $0x8] sm:$0xff] %vm1091, %v1383
      %1446 = vst.msk [vmem:[%s172 + $0x10] sm:$0xff] %vm1091, %v1385
      %1447 = vst.msk [vmem:[%s172 + $0x18] sm:$0xff] %vm1091, %v1387
      %1448 = vst.msk [vmem:[%s172 + $0x20] sm:$0xff] %vm1091, %v1389
      %1449 = vst.msk [vmem:[%s172 + $0x28] sm:$0xff] %vm1091, %v1391
      %1450 = vst.msk [vmem:[%s172 + $0x30] sm:$0xff] %vm1091, %v1393
      %1451 = vst.msk [vmem:[%s172 + $0x38] sm:$0xff] %vm1091, %v1395
      %1452 = vst.msk [vmem:[%s172 + $0x40] sm:$0xff] %vm1091, %v1397
      %1453 = vst.msk [vmem:[%s172 + $0x48] sm:$0xff] %vm1091, %v1399
      %1454 = vst.msk [vmem:[%s172 + $0x50] sm:$0xff] %vm1091, %v1401
      %1455 = vst.msk [vmem:[%s172 + $0x58] sm:$0xff] %vm1091, %v1403
      %1456 = vst.msk [vmem:[%s172 + $0x60] sm:$0xff] %vm1091, %v1405
      %1457 = vst.msk [vmem:[%s172 + $0x68] sm:$0xff] %vm1091, %v1407
      %1458 = vst.msk [vmem:[%s172 + $0x70] sm:$0xff] %vm1091, %v1409
      %1459 = vst.msk [vmem:[%s172 + $0x78] sm:$0xff] %vm1091, %v1411
      %1460 = vst.msk [vmem:[%s172 + $0x80] sm:$0xff] %vm1091, %v1413
      %1461 = vst.msk [vmem:[%s172 + $0x88] sm:$0xff] %vm1091, %v1415
      %1462 = vst.msk [vmem:[%s172 + $0x90] sm:$0xff] %vm1091, %v1417
      %1463 = vst.msk [vmem:[%s172 + $0x98] sm:$0xff] %vm1091, %v1419
      %1464 = vst.msk [vmem:[%s172 + $0xa0] sm:$0xff] %vm1091, %v1421
      %1465 = vst.msk [vmem:[%s172 + $0xa8] sm:$0xff] %vm1091, %v1423
      %1466 = vst.msk [vmem:[%s172 + $0xb0] sm:$0xff] %vm1091, %v1425
      %1467 = vst.msk [vmem:[%s172 + $0xb8] sm:$0xff] %vm1091, %v1427
      %1468 = vst.msk [vmem:[%s172 + $0xc0] sm:$0xff] %vm1091, %v1429
      %1469 = vst.msk [vmem:[%s172 + $0xc8] sm:$0xff] %vm1091, %v1431
      %1470 = vst.msk [vmem:[%s172 + $0xd0] sm:$0xff] %vm1091, %v1433
      %1471 = vst.msk [vmem:[%s172 + $0xd8] sm:$0xff] %vm1091, %v1435
      %1472 = vst.msk [vmem:[%s172 + $0xe0] sm:$0xff] %vm1091, %v1437
      %1473 = vst.msk [vmem:[%s172 + $0xe8] sm:$0xff] %vm1091, %v1439
      %1474 = vst.msk [vmem:[%s172 + $0xf0] sm:$0xff] %vm1091, %v1441
      %1475 = vst.msk [vmem:[%s172 + $0xf8] sm:$0xff] %vm1091, %v1443
      %s1476 = smul.u32 32, %s14
      %p1477 = scmp.lt.s32.totalorder %s1476, 63
      %s1478 = scalar_select %p1477, %s1476, 63
      %s1479 = smul.addr %s1478, 8
      %s1480 = scalar_lea.vmem %s3, %s1479
      // Predicated region
      $region33: #{policy_gradient_network.1} parent=31 // pred_check
        %p1481 = pneg %p100
      $region34: #{policy_gradient_network.1} parent=31 // pred_check_branch
        %1483 = sbr.rel (%p1481) target = $region36
      $region35: #{policy_gradient_network.1} parent=31 // pred_region
        %s1484 = smul.u32 32, %s14
      $region36: #{policy_gradient_network.1} parent=31 // pred_fallthru
        _
    $region32: #{policy_gradient_network.1} parent=5 // pred_fallthru
      _
    %p1485 = scmp.le.s32.totalorder 2, %s9
    // Predicated region
    $region37: #{policy_gradient_network.1} parent=5 // pred_check
      %p1486 = pneg %p1485
    $region38: #{policy_gradient_network.1} parent=5 // pred_check_branch
      %1488 = sbr.rel (%p1486) target = $region40
    $region39: #{policy_gradient_network.1} parent=5 // pred_region
      %s1489 = ssub.s32 %s9, 2
      // Predicated region
      $region41: #{policy_gradient_network.1} parent=39 // pred_check
        %p1490 = pneg %p106
      $region42: #{policy_gradient_network.1} parent=39 // pred_check_branch
        %1492 = sbr.rel (%p1490) target = $region44
      $region43: #{policy_gradient_network.1} parent=39 // pred_region
        %s1493 = smul.u32 32, %s15
        %p1494 = scmp.lt.s32.totalorder %s1493, 63
        %s1495 = scalar_select %p1494, %s1493, 63
        %s1496 = smul.addr %s1495, 8
        %s1497 = scalar_lea.vmem %s3, %s1496
      $region44: #{policy_gradient_network.1} parent=39 // pred_fallthru
        _
    $region40: #{policy_gradient_network.1} parent=5 // pred_fallthru
      _
  $region6: #{policy_gradient_network.1} parent=0 // loop_footer
    %s13 = sadd.s32 1, %s9
  $region7: #{policy_gradient_network.1} parent=0 // loop_footer_branch
    %8 = sbr.rel target = $region3
  $region8: #{policy_gradient_network.1} parent=0 // loop_exit
    _

</llo_original>
